<compile_context>
chip_gen: v6e
topology: v6e:2x2x1
jax: 0.10.0
libtpu: 0.0.40
codegen_flags: <defaults>
</compile_context>

<pallas_src>
import functools

import jax
import jax.numpy as jnp
from jax.experimental import pallas as pl
from jax.experimental.pallas import tpu as pltpu


def _round_up(x, m):
    return (x + m - 1) // m * m


def _vmem_capacity_bytes():
    """Physical VMEM per TensorCore; conservative 64 MiB (v7x) fallback."""
    try:
        cap = getattr(pltpu.get_tpu_info(), "vmem_capacity_bytes", None)
        if cap:
            return int(cap)
    except Exception:
        pass
    return 64 * 1024 * 1024


def _footprint_bytes(n_pad, bm, tk, in_bytes):
    """Rough per-step VMEM footprint (inputs double-buffered by BlockSpec)."""
    x_tile = 2 * n_pad * tk * in_bytes       # double-buffered (n_pad, tk) feature tile
    sq_tmp = 2 * n_pad * tk * 4              # f32 cast + square temporaries
    gram = bm * n_pad * 4                    # Gram row-slab accumulator
    norms = (bm + 8 * n_pad) * 4             # row / column norm scratch
    epilogue = 3 * bm * n_pad * 4            # dist2 + masked copies (transient)
    small = 4 * (2 * n_pad + 5 * bm)         # labels + per-row outputs
    return x_tile + sq_tmp + gram + norms + epilogue + small


def _choose_tiles(n, d, in_bytes, budget):
    """Pick (bm, tk, n_pad, d_pad): biggest row block / feature tile that fits."""
    d_pad = _round_up(d, 128)
    n8 = _round_up(n, 8)
    bm_cands = sorted({c for c in (1024, 512, 256, 128, 8) if c <= n8} | {n8},
                      reverse=True)
    tk_cands = sorted({c for c in (2048, 1024, 512, 256, 128) if d_pad % c == 0}
                      | ({d_pad} if d_pad <= 4096 else set()), reverse=True)
    for bm in bm_cands:
        n_pad = _round_up(n8, bm)
        for tk in tk_cands:
            if _footprint_bytes(n_pad, bm, tk, in_bytes) <= budget:
                return bm, tk, n_pad, d_pad
    bm = bm_cands[-1]
    return bm, tk_cands[-1], _round_up(n8, bm), d_pad


def _triplet_kernel(x_ref, t_blk_ref, t_all_ref, loss_ref, correct_ref,
                    gram_acc, sqr_acc, sqc_acc, *, bm, margin, n_valid):
    k = pl.program_id(1)

    @pl.when(k == 0)
    def _init():
        gram_acc[...] = jnp.zeros_like(gram_acc)
        sqr_acc[...] = jnp.zeros_like(sqr_acc)
        sqc_acc[...] = jnp.zeros_like(sqc_acc)

    xf = x_ref[...]                                    # (n_pad, tk), input dtype
    row_start = pl.multiple_of(pl.program_id(0) * bm, bm)
    xb = x_ref[pl.ds(row_start, bm), :]                # (bm, tk) rows of this block

    # Row-block x all-samples Gram contribution on the MXU (contract the feature
    # axis of BOTH operands -> no transposed copy; f32 accumulation).
    gram_acc[...] += jax.lax.dot_general(
        xb, xf, dimension_numbers=(((1,), (1,)), ((), ())),
        preferred_element_type=jnp.float32)            # (bm, n_pad)

    # Column squared norms, lane-dense, via an MXU ones-matvec (8 identical rows
    # keep the sublane dim aligned; only row 0 is consumed).  This keeps the big
    # lane reduction off the VPU/XLU and removes the epilogue transpose.
    xf32 = xf.astype(jnp.float32)
    xf2 = xf32 * xf32
    ones8 = jnp.ones((8, xf2.shape[1]), jnp.float32)
    sqc_acc[...] += jax.lax.dot_general(
        ones8, xf2, dimension_numbers=(((1,), (1,)), ((), ())),
        preferred_element_type=jnp.float32)            # (8, n_pad)

    # Row-block squared norms: small (bm, tk) exact-f32 reduce on the VPU.
    xb32 = xb.astype(jnp.float32)
    sqr_acc[...] += jnp.sum(xb32 * xb32, axis=1, keepdims=True)   # (bm, 1)

    @pl.when(k == pl.num_programs(1) - 1)
    def _epilogue():
        sq_row = sqr_acc[...]                          # (bm, 1)
        sq_col = sqc_acc[0:1, :]                       # (1, n_pad)
        # Pairwise squared distances for this row block only: (bm, n_pad).
        dist2 = sq_row + sq_col - 2.0 * gram_acc[...]

        same = t_blk_ref[...] == t_all_ref[...]        # (bm, n_pad) bool
        col = jax.lax.broadcasted_iota(jnp.int32, dist2.shape, 1)
        valid = col < n_valid                          # mask out padded columns

        neg_inf = jnp.float32(-jnp.inf)
        pos_inf = jnp.float32(jnp.inf)
        # Hard mining on *squared* distances (sqrt(clamp(.)) is monotone, so the
        # arg-extrema match the reference); sqrt only on the (bm, 1) results.
        d2_ap = jnp.max(jnp.where(same & valid, dist2, neg_inf),
                        axis=1, keepdims=True)
        d2_an = jnp.min(jnp.where(jnp.logical_and(jnp.logical_not(same), valid),
                                  dist2, pos_inf),
                        axis=1, keepdims=True)
        dist_ap = jnp.sqrt(jnp.maximum(d2_ap, jnp.float32(1e-12)))
        dist_an = jnp.sqrt(jnp.maximum(d2_an, jnp.float32(1e-12)))

        # MarginRankingLoss(margin)(dist_an, dist_ap, y=1), per-row terms; the
        # wrapper slices off padded rows and takes the mean / sum.
        loss_ref[...] = jnp.maximum(dist_ap - dist_an + jnp.float32(margin), 0.0)
        correct_ref[...] = (dist_an >= dist_ap).astype(jnp.int32)


def ori_triplet_loss(inputs, targets, margin=0.3):
    """JAX/Pallas equivalent of OriTripletLoss.forward.

    Args:
      inputs:  (N, D) feature matrix (f32 or bf16; other dtypes upcast to f32).
      targets: (N,)   integer identity labels.
    Returns:
      (loss, correct): f32 mean triplet loss, i32 count of dist_an >= dist_ap.
    """
    if inputs.dtype != jnp.bfloat16:
        inputs = inputs.astype(jnp.float32)
    n, d = inputs.shape
    in_bytes = jnp.dtype(inputs.dtype).itemsize

    cap = _vmem_capacity_bytes()
    bm, tk, n_pad, d_pad = _choose_tiles(n, d, in_bytes, budget=int(cap * 0.7))
    n_blocks, n_k = n_pad // bm, d_pad // tk

    # Zero rows/cols are inert for distances; padded columns are masked in-kernel
    # and padded rows are sliced off below.
    x = jnp.pad(inputs, ((0, n_pad - n), (0, d_pad - d)))
    t = jnp.pad(targets.astype(jnp.int32), (0, n_pad - n), constant_values=-1)
    t_col = t.reshape(n_pad, 1)       # row-block labels (sublane-oriented)
    t_row = t.reshape(1, n_pad)       # all labels (lane-dense, resident)

    kernel = functools.partial(_triplet_kernel, bm=bm, margin=float(margin),
                               n_valid=n)
    grid_spec = pltpu.PrefetchScalarGridSpec(
        num_scalar_prefetch=0,
        grid=(n_blocks, n_k),                      # (parallel rows, feature reduction)
        in_specs=[
            pl.BlockSpec((n_pad, tk), lambda i, k: (0, k)),   # all samples, feature tile k
            pl.BlockSpec((bm, 1), lambda i, k: (i, 0)),       # labels of this row block
            pl.BlockSpec((1, n_pad), lambda i, k: (0, 0)),    # all labels
        ],
        out_specs=(
            pl.BlockSpec((bm, 1), lambda i, k: (i, 0)),       # per-row loss terms
            pl.BlockSpec((bm, 1), lambda i, k: (i, 0)),       # per-row correct flags
        ),
        scratch_shapes=[
            pltpu.VMEM((bm, n_pad), jnp.float32),  # Gram row-slab accumulator
            pltpu.VMEM((bm, 1), jnp.float32),      # row-block squared norms
            pltpu.VMEM((8, n_pad), jnp.float32),   # column squared norms (row 0 used)
        ],
    )

    fp = _footprint_bytes(n_pad, bm, tk, in_bytes)
    vmem_limit = int(min(cap * 0.9, max(1.4 * fp + (2 << 20), 32 << 20)))

    losses, corrects = pl.pallas_call(
        kernel,
        out_shape=(
            jax.ShapeDtypeStruct((n_pad, 1), jnp.float32),
            jax.ShapeDtypeStruct((n_pad, 1), jnp.int32),
        ),
        grid_spec=grid_spec,
        compiler_params=pltpu.CompilerParams(
            dimension_semantics=("parallel", "arbitrary"),
            vmem_limit_bytes=vmem_limit,
        ),
    )(x, t_col, t_row)

    # Tiny final reductions in the wrapper; padded rows are sliced off.
    loss = jnp.sum(losses[:n, 0]) / n
    correct = jnp.sum(corrects[:n, 0])
    return loss, correct


def _reference(inputs, targets, margin=0.3):
    """Pure-JAX reference (no MXU matmul) mirroring the PyTorch module."""
    x = inputs.astype(jnp.float32)
    diff = x[:, None, :] - x[None, :, :]
    dist = jnp.sqrt(jnp.maximum(jnp.sum(diff * diff, axis=-1), 1e-12))
    mask = targets[:, None] == targets[None, :]
    dist_ap = jnp.max(jnp.where(mask, dist, -jnp.inf), axis=1)
    dist_an = jnp.min(jnp.where(mask, jnp.inf, dist), axis=1)
    loss = jnp.mean(jnp.maximum(dist_ap - dist_an + margin, 0.0))
    correct = jnp.sum((dist_an >= dist_ap).astype(jnp.int32))
    return loss, correct


if __name__ == "__main__":
    key = jax.random.PRNGKey(0)
    batch, feat_dim = 8, 32
    inputs = jax.random.normal(key, (batch, feat_dim), dtype=jnp.float32)
    # 4 identities, 2 samples each (every row has >= 1 positive and >= 1 negative).
    targets = jnp.array([0, 1, 2, 3, 0, 1, 2, 3], dtype=jnp.int32)

    loss, correct = ori_triplet_loss(inputs, targets, margin=0.3)
    jax.block_until_ready((loss, correct))

    ref_loss, ref_correct = _reference(inputs, targets, margin=0.3)
    # The kernel's Gram / norm matmuls run at the MXU's default precision
    # (bf16 passes for f32 operands), so allow small absolute slack against the
    # exact-f32 (matmul-free) reference.
    assert abs(float(loss) - float(ref_loss)) < 2e-2, (float(loss), float(ref_loss))
    assert int(correct) == int(ref_correct), (int(correct), int(ref_correct))
    print("KERNEL_OK")
</pallas_src>

<mosaic_0001>
module attributes {stable_mosaic.version = 11 : i64} {
  func.func @_triplet_kernel(%arg0: i32, %arg1: i32, %arg2: memref<8x128xf32, #tpu.memory_space<vmem>>, %arg3: memref<8x1xi32, #tpu.memory_space<vmem>>, %arg4: memref<1x8xi32, #tpu.memory_space<vmem>>, %arg5: memref<8x1xf32, #tpu.memory_space<vmem>>, %arg6: memref<8x1xi32, #tpu.memory_space<vmem>>, %arg7: memref<8x8xf32, #tpu.memory_space<vmem>>, %arg8: memref<8x1xf32, #tpu.memory_space<vmem>>, %arg9: memref<8x8xf32, #tpu.memory_space<vmem>>) attributes {dimension_semantics = [#tpu.dimension_semantics<parallel>, #tpu.dimension_semantics<arbitrary>], iteration_bounds = array<i64: 1, 1>, scalar_prefetch = 0 : i64, scratch_operands = 3 : i64, tpu.core_type = #tpu.core_type<tc>, window_params = [{transform_indices = @transform_0, window_bounds = array<i64: 8, 128>}, {transform_indices = @transform_1, window_bounds = array<i64: 8, 1>}, {pipeline_mode = #tpu.pipeline_mode<synchronous>, transform_indices = @transform_2, window_bounds = array<i64: 1, 8>}, {transform_indices = @transform_3, window_bounds = array<i64: 8, 1>}, {transform_indices = @transform_4, window_bounds = array<i64: 8, 1>}]} {
    %c0_i32 = arith.constant 0 : i32
    %0 = arith.cmpi eq, %arg1, %c0_i32 : i32
    %1 = arith.extui %0 : i1 to i32
    %c0_i32_0 = arith.constant 0 : i32
    %2 = arith.cmpi ne, %1, %c0_i32_0 : i32
    scf.if %2 {
      %cst_20 = arith.constant 0.000000e+00 : f32
      %27 = vector.broadcast %cst_20 : f32 to vector<8x8xf32>
      %c0_21 = arith.constant 0 : index
      %c0_22 = arith.constant 0 : index
      %28 = vector.load %arg7[%c0_21, %c0_22] : memref<8x8xf32, #tpu.memory_space<vmem>>, vector<8x8xf32>
      tpu.vector_store %arg7[%c0_21, %c0_22], %27 {strides = array<i32>} : memref<8x8xf32, #tpu.memory_space<vmem>>, vector<8x8xf32>,
      %cst_23 = arith.constant 0.000000e+00 : f32
      %29 = vector.broadcast %cst_23 : f32 to vector<8x1xf32>
      %c0_24 = arith.constant 0 : index
      %c0_25 = arith.constant 0 : index
      %30 = vector.load %arg8[%c0_24, %c0_25] : memref<8x1xf32, #tpu.memory_space<vmem>>, vector<8x1xf32>
      tpu.vector_store %arg8[%c0_24, %c0_25], %29 {strides = array<i32>} : memref<8x1xf32, #tpu.memory_space<vmem>>, vector<8x1xf32>,
      %cst_26 = arith.constant 0.000000e+00 : f32
      %31 = vector.broadcast %cst_26 : f32 to vector<8x8xf32>
      %c0_27 = arith.constant 0 : index
      %c0_28 = arith.constant 0 : index
      %32 = vector.load %arg9[%c0_27, %c0_28] : memref<8x8xf32, #tpu.memory_space<vmem>>, vector<8x8xf32>
      tpu.vector_store %arg9[%c0_27, %c0_28], %31 {strides = array<i32>} : memref<8x8xf32, #tpu.memory_space<vmem>>, vector<8x8xf32>,
    } else {
    }
    %c0 = arith.constant 0 : index
    %c0_1 = arith.constant 0 : index
    %3 = vector.load %arg2[%c0, %c0_1] : memref<8x128xf32, #tpu.memory_space<vmem>>, vector<8x128xf32>
    %c8_i32 = arith.constant 8 : i32
    %4 = arith.muli %arg0, %c8_i32 : i32
    %5 = tpu.assume_multiple %4, 8 : i32
    %6 = arith.index_cast %5 : i32 to index
    %c0_2 = arith.constant 0 : index
    %7 = vector.load %arg2[%6, %c0_2] : memref<8x128xf32, #tpu.memory_space<vmem>>, vector<8x128xf32>
    %c0_3 = arith.constant 0 : index
    %c0_4 = arith.constant 0 : index
    %8 = vector.load %arg7[%c0_3, %c0_4] : memref<8x8xf32, #tpu.memory_space<vmem>>, vector<8x8xf32>
    %cst = arith.constant dense<0.000000e+00> : vector<8x8xf32>
    %9 = tpu.matmul %7, %3, %cst {dimension_numbers = #tpu.dot_dimension_numbers<[1], [1], [0], [0], [0, 0, 1, 0], [], []>} : vector<8x128xf32>, vector<8x128xf32>, vector<8x8xf32> -> vector<8x8xf32>
    %10 = arith.addf %8, %9 : vector<8x8xf32>
    %c0_5 = arith.constant 0 : index
    %c0_6 = arith.constant 0 : index
    %11 = vector.load %arg7[%c0_5, %c0_6] : memref<8x8xf32, #tpu.memory_space<vmem>>, vector<8x8xf32>
    tpu.vector_store %arg7[%c0_5, %c0_6], %10 {strides = array<i32>} : memref<8x8xf32, #tpu.memory_space<vmem>>, vector<8x8xf32>,
    %12 = arith.mulf %3, %3 : vector<8x128xf32>
    %cst_7 = arith.constant 1.000000e+00 : f32
    %13 = vector.broadcast %cst_7 : f32 to vector<8x128xf32>
    %c0_8 = arith.constant 0 : index
    %c0_9 = arith.constant 0 : index
    %14 = vector.load %arg9[%c0_8, %c0_9] : memref<8x8xf32, #tpu.memory_space<vmem>>, vector<8x8xf32>
    %cst_10 = arith.constant dense<0.000000e+00> : vector<8x8xf32>
    %15 = tpu.matmul %13, %12, %cst_10 {dimension_numbers = #tpu.dot_dimension_numbers<[1], [1], [0], [0], [0, 0, 1, 0], [], []>} : vector<8x128xf32>, vector<8x128xf32>, vector<8x8xf32> -> vector<8x8xf32>
    %16 = arith.addf %14, %15 : vector<8x8xf32>
    %c0_11 = arith.constant 0 : index
    %c0_12 = arith.constant 0 : index
    %17 = vector.load %arg9[%c0_11, %c0_12] : memref<8x8xf32, #tpu.memory_space<vmem>>, vector<8x8xf32>
    tpu.vector_store %arg9[%c0_11, %c0_12], %16 {strides = array<i32>} : memref<8x8xf32, #tpu.memory_space<vmem>>, vector<8x8xf32>,
    %c0_13 = arith.constant 0 : index
    %c0_14 = arith.constant 0 : index
    %18 = vector.load %arg8[%c0_13, %c0_14] : memref<8x1xf32, #tpu.memory_space<vmem>>, vector<8x1xf32>
    %19 = arith.mulf %7, %7 : vector<8x128xf32>
    %cst_15 = arith.constant dense<0.000000e+00> : vector<8xf32>
    %20 = vector.multi_reduction <add>, %19, %cst_15 [1] : vector<8x128xf32> to vector<8xf32>
    %21 = vector.shape_cast %20 : vector<8xf32> to vector<8x1xf32>
    %22 = arith.addf %18, %21 : vector<8x1xf32>
    %c0_16 = arith.constant 0 : index
    %c0_17 = arith.constant 0 : index
    %23 = vector.load %arg8[%c0_16, %c0_17] : memref<8x1xf32, #tpu.memory_space<vmem>>, vector<8x1xf32>
    tpu.vector_store %arg8[%c0_16, %c0_17], %22 {strides = array<i32>} : memref<8x1xf32, #tpu.memory_space<vmem>>, vector<8x1xf32>,
    %c0_i32_18 = arith.constant 0 : i32
    %24 = arith.cmpi eq, %arg1, %c0_i32_18 : i32
    %25 = arith.extui %24 : i1 to i32
    %c0_i32_19 = arith.constant 0 : i32
    %26 = arith.cmpi ne, %25, %c0_i32_19 : i32
    scf.if %26 {
      %c0_20 = arith.constant 0 : index
      %c0_21 = arith.constant 0 : index
      %27 = vector.load %arg8[%c0_20, %c0_21] : memref<8x1xf32, #tpu.memory_space<vmem>>, vector<8x1xf32>
      %c0_22 = arith.constant 0 : index
      %c0_23 = arith.constant 0 : index
      %28 = vector.load %arg9[%c0_22, %c0_23] : memref<8x8xf32, #tpu.memory_space<vmem>>, vector<1x8xf32>
      %29 = vector.broadcast %27 : vector<8x1xf32> to vector<8x8xf32>
      %30 = vector.broadcast %28 : vector<1x8xf32> to vector<8x8xf32>
      %31 = arith.addf %29, %30 : vector<8x8xf32>
      %c0_24 = arith.constant 0 : index
      %c0_25 = arith.constant 0 : index
      %32 = vector.load %arg7[%c0_24, %c0_25] : memref<8x8xf32, #tpu.memory_space<vmem>>, vector<8x8xf32>
      %cst_26 = arith.constant 2.000000e+00 : f32
      %33 = vector.broadcast %cst_26 : f32 to vector<8x8xf32>
      %34 = arith.mulf %33, %32 : vector<8x8xf32>
      %35 = arith.subf %31, %34 : vector<8x8xf32>
      %c0_27 = arith.constant 0 : index
      %c0_28 = arith.constant 0 : index
      %36 = vector.load %arg3[%c0_27, %c0_28] : memref<8x1xi32, #tpu.memory_space<vmem>>, vector<8x1xi32>
      %c0_29 = arith.constant 0 : index
      %c0_30 = arith.constant 0 : index
      %37 = vector.load %arg4[%c0_29, %c0_30] : memref<1x8xi32, #tpu.memory_space<vmem>>, vector<1x8xi32>
      %38 = vector.broadcast %36 : vector<8x1xi32> to vector<8x8xi32>
      %39 = vector.broadcast %37 : vector<1x8xi32> to vector<8x8xi32>
      %40 = arith.cmpi eq, %38, %39 : vector<8x8xi32>
      %41 = tpu.iota {dimensions = array<i32: 1>} : vector<8x8xi32>
      %c8_i32_31 = arith.constant 8 : i32
      %42 = vector.broadcast %c8_i32_31 : i32 to vector<8x8xi32>
      %43 = arith.cmpi slt, %41, %42 : vector<8x8xi32>
      %44 = arith.andi %40, %43 : vector<8x8xi1>
      %cst_32 = arith.constant 0xFF800000 : f32
      %45 = vector.broadcast %cst_32 : f32 to vector<8x8xf32>
      %46 = arith.select %44, %35, %45 : vector<8x8xi1>, vector<8x8xf32>
      %cst_33 = arith.constant dense<0xFF800000> : vector<8xf32>
      %47 = vector.multi_reduction <maximumf>, %46, %cst_33 [1] : vector<8x8xf32> to vector<8xf32>
      %48 = vector.shape_cast %47 : vector<8xf32> to vector<8x1xf32>
      %cst_34 = arith.constant dense<true> : vector<8x8xi1>
      %49 = arith.xori %40, %cst_34 : vector<8x8xi1>
      %50 = arith.andi %49, %43 : vector<8x8xi1>
      %cst_35 = arith.constant 0x7F800000 : f32
      %51 = vector.broadcast %cst_35 : f32 to vector<8x8xf32>
      %52 = arith.select %50, %35, %51 : vector<8x8xi1>, vector<8x8xf32>
      %cst_36 = arith.constant dense<0x7F800000> : vector<8xf32>
      %53 = vector.multi_reduction <minimumf>, %52, %cst_36 [1] : vector<8x8xf32> to vector<8xf32>
      %54 = vector.shape_cast %53 : vector<8xf32> to vector<8x1xf32>
      %cst_37 = arith.constant 9.99999996E-13 : f32
      %55 = vector.broadcast %cst_37 : f32 to vector<8x1xf32>
      %56 = arith.maximumf %48, %55 : vector<8x1xf32>
      %57 = math.sqrt %56 : vector<8x1xf32>
      %cst_38 = arith.constant 9.99999996E-13 : f32
      %58 = vector.broadcast %cst_38 : f32 to vector<8x1xf32>
      %59 = arith.maximumf %54, %58 : vector<8x1xf32>
      %60 = math.sqrt %59 : vector<8x1xf32>
      %61 = arith.subf %57, %60 : vector<8x1xf32>
      %cst_39 = arith.constant 3.000000e-01 : f32
      %62 = vector.broadcast %cst_39 : f32 to vector<8x1xf32>
      %63 = arith.addf %61, %62 : vector<8x1xf32>
      %cst_40 = arith.constant 0.000000e+00 : f32
      %64 = vector.broadcast %cst_40 : f32 to vector<8x1xf32>
      %65 = arith.maximumf %63, %64 : vector<8x1xf32>
      %c0_41 = arith.constant 0 : index
      %c0_42 = arith.constant 0 : index
      %66 = vector.load %arg5[%c0_41, %c0_42] : memref<8x1xf32, #tpu.memory_space<vmem>>, vector<8x1xf32>
      tpu.vector_store %arg5[%c0_41, %c0_42], %65 {strides = array<i32>} : memref<8x1xf32, #tpu.memory_space<vmem>>, vector<8x1xf32>,
      %67 = arith.cmpf oge, %60, %57 : vector<8x1xf32>
      %68 = arith.extui %67 : vector<8x1xi1> to vector<8x1xi32>
      %c0_43 = arith.constant 0 : index
      %c0_44 = arith.constant 0 : index
      %69 = vector.load %arg6[%c0_43, %c0_44] : memref<8x1xi32, #tpu.memory_space<vmem>>, vector<8x1xi32>
      tpu.vector_store %arg6[%c0_43, %c0_44], %68 {strides = array<i32>} : memref<8x1xi32, #tpu.memory_space<vmem>>, vector<8x1xi32>,
    } else {
    }
    return
  }
  func.func @transform_0(%arg0: i32, %arg1: i32) -> (i32, i32) {
    %c0_i32 = arith.constant 0 : i32
    %c0_i32_0 = arith.constant 0 : i32
    return %c0_i32, %arg1 : i32, i32
  }
  func.func @transform_1(%arg0: i32, %arg1: i32) -> (i32, i32) {
    %c0_i32 = arith.constant 0 : i32
    %c0_i32_0 = arith.constant 0 : i32
    return %arg0, %c0_i32 : i32, i32
  }
  func.func @transform_2(%arg0: i32, %arg1: i32) -> (i32, i32) {
    %c0_i32 = arith.constant 0 : i32
    %c0_i32_0 = arith.constant 0 : i32
    %c0_i32_1 = arith.constant 0 : i32
    return %c0_i32, %c0_i32_0 : i32, i32
  }
  func.func @transform_3(%arg0: i32, %arg1: i32) -> (i32, i32) {
    %c0_i32 = arith.constant 0 : i32
    %c0_i32_0 = arith.constant 0 : i32
    return %arg0, %c0_i32 : i32, i32
  }
  func.func @transform_4(%arg0: i32, %arg1: i32) -> (i32, i32) {
    %c0_i32 = arith.constant 0 : i32
    %c0_i32_0 = arith.constant 0 : i32
    return %arg0, %c0_i32 : i32, i32
  }
}

</mosaic_0001>

<llo_original>
// kernel: tpu_custom_call.1
$region0: #{tpu_custom_call.1}
  #allocation0 [shape = 'u32[]', space=smem, size = 0x4, offset = 0x4, fixed_abs, tag = 'smem constant byte address 0x4 - core index']
  #allocation1 [shape = 'u32[144,128]{1,0:T(1,128)}', space=vmem, size = 0x12000, scoped, tag = 'internal scratch']
  #allocation2 [shape = 'f32[8,8]{1,0:T(8,128)}', space=vmem, size = 0x1000, scoped, tag = 'scratch operand']
  #allocation3 [shape = 'f32[8,1]{1,0:T(8,128)}', space=vmem, size = 0x1000, scoped, tag = 'scratch operand']
  #allocation4 [shape = 'f32[8,8]{1,0:T(8,128)}', space=vmem, size = 0x1000, scoped, tag = 'scratch operand']
  %s0 = inlined_call_operand.vmem [shape: f32[8,128], index: 0, kind: input, shape index: {}]
  %s1 = inlined_call_operand.vmem [shape: s32[8,1], index: 1, kind: input, shape index: {}]
  %s2 = inlined_call_operand.vmem [shape: s32[1,8], index: 2, kind: input, shape index: {}]
  %s3 = inlined_call_operand.vmem [shape: f32[8,1], index: 3, kind: output, shape index: {0}]
  %s4 = inlined_call_operand.vmem [shape: s32[8,1], index: 4, kind: output, shape index: {1}]
  %5 = xla_tuple %s3, %s4
  %s6 = sld [smem:[#allocation0]]
  $region38: #{tpu_custom_call.1} parent=0
    _
  %s8 = ssub.s32 1, %s6
  %s9 = scalar_select 0, %s8, %s6
  // Predicated region
  $region2: #{tpu_custom_call.1} parent=0 // pred_check
    _
  $region3: #{tpu_custom_call.1} parent=0 // pred_check_branch
    %11 = sbr.rel (0) target = $region5
  $region4: #{tpu_custom_call.1} parent=0 // pred_region
    _
  $region5: #{tpu_custom_call.1} parent=0 // pred_fallthru
    _
  // Predicated region
  $region6: #{tpu_custom_call.1} parent=0 // pred_check
    _
  $region7: #{tpu_custom_call.1} parent=0 // pred_check_branch
    %13 = sbr.rel (0) target = $region9
  $region8: #{tpu_custom_call.1} parent=0 // pred_region
    _
  $region9: #{tpu_custom_call.1} parent=0 // pred_fallthru
    _
  // Predicated region
  $region10: #{tpu_custom_call.1} parent=0 // pred_check
    _
  $region11: #{tpu_custom_call.1} parent=0 // pred_check_branch
    %15 = sbr.rel (0) target = $region13
  $region12: #{tpu_custom_call.1} parent=0 // pred_region
    _
  $region13: #{tpu_custom_call.1} parent=0 // pred_fallthru
    _
  %p16 = scmp.eq.s32.totalorder 0, 0
  // Predicated region
  $region14: #{tpu_custom_call.1} parent=0 // pred_check
    %p17 = pneg %p16
  $region15: #{tpu_custom_call.1} parent=0 // pred_check_branch
    %19 = sbr.rel (%p17) target = $region17
  $region16: #{tpu_custom_call.1} parent=0 // pred_region
    %vm20 = vcmask 64512
    %21 = vst.msk [vmem:[#allocation2] sm:$0xff] %vm20, 0.0
    %vm22 = vcmask 7168
    %23 = vst.msk [vmem:[#allocation3] sm:$0xff] %vm22, 0.0
    %24 = vst.msk [vmem:[#allocation4] sm:$0xff] %vm20, 0.0
  $region17: #{tpu_custom_call.1} parent=0 // pred_fallthru
    _
  %v25 = vld [vmem:[%s0] sm:$0xff]
  %s26 = smul.u32 0, 8
  %s27 = scalar_lea.vmem %s0, %s26
  %v28 = vld [vmem:[%s27] sm:$0xff]
  %v29 = vld [vmem:[#allocation2] sm:$0xff]
  %30 = vmatprep.subr.mxu0 0.0
  %31 = vmatpush1.xpose.msra.mxu0 0.0
  %32 = vmatprep.subr.mxu0 0.0
  %33 = vmatpush1.xpose.msra.mxu0 0.0
  %34 = vmatprep.subr.mxu0 0.0
  %35 = vmatpush1.xpose.msra.mxu0 0.0
  %36 = vmatprep.subr.mxu0 0.0
  %37 = vmatpush1.xpose.msra.mxu0 0.0
  %38 = vmatprep.subr.mxu0 0.0
  %39 = vmatpush1.xpose.msra.mxu0 0.0
  %40 = vmatprep.subr.mxu0 0.0
  %41 = vmatpush1.xpose.msra.mxu0 0.0
  %42 = vmatprep.subr.mxu0 0.0
  %43 = vmatpush1.xpose.msra.mxu0 0.0
  %44 = vmatprep.subr.mxu0 0.0
  %45 = vmatpush1.xpose.msra.mxu0 0.0
  %46 = vmatprep.subr.mxu0 0.0
  %47 = vmatpush1.xpose.msra.mxu0 0.0
  %48 = vmatprep.subr.mxu0 0.0
  %49 = vmatpush1.xpose.msra.mxu0 0.0
  %50 = vmatprep.subr.mxu0 0.0
  %51 = vmatpush1.xpose.msra.mxu0 0.0
  %52 = vmatprep.subr.mxu0 0.0
  %53 = vmatpush1.xpose.msra.mxu0 0.0
  %54 = vmatprep.subr.mxu0 0.0
  %55 = vmatpush1.xpose.msra.mxu0 0.0
  %56 = vmatprep.subr.mxu0 0.0
  %57 = vmatpush1.xpose.msra.mxu0 0.0
  %58 = vmatprep.subr.mxu0 0.0
  %59 = vmatpush1.xpose.msra.mxu0 0.0
  %60 = vmatprep.subr.mxu0 0.0
  %61 = vmatpush1.xpose.msra.mxu0 %v25
  %62 = vmatprep.subr.mxu0 0.0
  %63 = vmatpush2.xpose.msra.mxu0 0.0
  %64 = vmatprep.subr.mxu0 0.0
  %65 = vmatpush2.xpose.msra.mxu0 0.0
  %66 = vmatprep.subr.mxu0 0.0
  %67 = vmatpush2.xpose.msra.mxu0 0.0
  %68 = vmatprep.subr.mxu0 0.0
  %69 = vmatpush2.xpose.msra.mxu0 0.0
  %70 = vmatprep.subr.mxu0 0.0
  %71 = vmatpush2.xpose.msra.mxu0 0.0
  %72 = vmatprep.subr.mxu0 0.0
  %73 = vmatpush2.xpose.msra.mxu0 0.0
  %74 = vmatprep.subr.mxu0 0.0
  %75 = vmatpush2.xpose.msra.mxu0 0.0
  %76 = vmatprep.subr.mxu0 0.0
  %77 = vmatpush2.xpose.msra.mxu0 0.0
  %78 = vmatprep.subr.mxu0 0.0
  %79 = vmatpush2.xpose.msra.mxu0 0.0
  %80 = vmatprep.subr.mxu0 0.0
  %81 = vmatpush2.xpose.msra.mxu0 0.0
  %82 = vmatprep.subr.mxu0 0.0
  %83 = vmatpush2.xpose.msra.mxu0 0.0
  %84 = vmatprep.subr.mxu0 0.0
  %85 = vmatpush2.xpose.msra.mxu0 0.0
  %86 = vmatprep.subr.mxu0 0.0
  %87 = vmatpush2.xpose.msra.mxu0 0.0
  %88 = vmatprep.subr.mxu0 0.0
  %89 = vmatpush2.xpose.msra.mxu0 0.0
  %90 = vmatprep.subr.mxu0 0.0
  %91 = vmatpush2.xpose.msra.mxu0 0.0
  %92 = vmatprep.subr.mxu0 0.0
  %93 = vmatpush2.xpose.msra.mxu0 0.0
  %94 = vmatprep.mubr.f32.mxu0 0.0
  %95 = vmatmul.mubr.f32.gmra.mxu0 %v28
  %v96 = vpop.f32.mrf.mxu0
  %v97 = vadd.f32 0.0, %v96
  %v98 = vpop.f32.mrf.mxu0
  %99 = vdwg.mxu0
  %v100 = vadd.f32 %v29, %v97
  %vm101 = vcmask 64512
  %102 = vst.msk [vmem:[#allocation2] sm:$0xff] %vm101, %v100
  %v103 = vmul.f32 %v25, %v25
  %v104 = vld [vmem:[#allocation4] sm:$0xff]
  %105 = vmatprep.subr.mxu0 0.0
  %106 = vmatpush1.xpose.msra.mxu0 0.0
  %107 = vmatprep.subr.mxu0 0.0
  %108 = vmatpush1.xpose.msra.mxu0 0.0
  %109 = vmatprep.subr.mxu0 0.0
  %110 = vmatpush1.xpose.msra.mxu0 0.0
  %111 = vmatprep.subr.mxu0 0.0
  %112 = vmatpush1.xpose.msra.mxu0 0.0
  %113 = vmatprep.subr.mxu0 0.0
  %114 = vmatpush1.xpose.msra.mxu0 0.0
  %115 = vmatprep.subr.mxu0 0.0
  %116 = vmatpush1.xpose.msra.mxu0 0.0
  %117 = vmatprep.subr.mxu0 0.0
  %118 = vmatpush1.xpose.msra.mxu0 0.0
  %119 = vmatprep.subr.mxu0 0.0
  %120 = vmatpush1.xpose.msra.mxu0 0.0
  %121 = vmatprep.subr.mxu0 0.0
  %122 = vmatpush1.xpose.msra.mxu0 0.0
  %123 = vmatprep.subr.mxu0 0.0
  %124 = vmatpush1.xpose.msra.mxu0 0.0
  %125 = vmatprep.subr.mxu0 0.0
  %126 = vmatpush1.xpose.msra.mxu0 0.0
  %127 = vmatprep.subr.mxu0 0.0
  %128 = vmatpush1.xpose.msra.mxu0 0.0
  %129 = vmatprep.subr.mxu0 0.0
  %130 = vmatpush1.xpose.msra.mxu0 0.0
  %131 = vmatprep.subr.mxu0 0.0
  %132 = vmatpush1.xpose.msra.mxu0 0.0
  %133 = vmatprep.subr.mxu0 0.0
  %134 = vmatpush1.xpose.msra.mxu0 0.0
  %135 = vmatprep.subr.mxu0 0.0
  %136 = vmatpush1.xpose.msra.mxu0 %v103
  %137 = vmatprep.subr.mxu0 0.0
  %138 = vmatpush2.xpose.msra.mxu0 0.0
  %139 = vmatprep.subr.mxu0 0.0
  %140 = vmatpush2.xpose.msra.mxu0 0.0
  %141 = vmatprep.subr.mxu0 0.0
  %142 = vmatpush2.xpose.msra.mxu0 0.0
  %143 = vmatprep.subr.mxu0 0.0
  %144 = vmatpush2.xpose.msra.mxu0 0.0
  %145 = vmatprep.subr.mxu0 0.0
  %146 = vmatpush2.xpose.msra.mxu0 0.0
  %147 = vmatprep.subr.mxu0 0.0
  %148 = vmatpush2.xpose.msra.mxu0 0.0
  %149 = vmatprep.subr.mxu0 0.0
  %150 = vmatpush2.xpose.msra.mxu0 0.0
  %151 = vmatprep.subr.mxu0 0.0
  %152 = vmatpush2.xpose.msra.mxu0 0.0
  %153 = vmatprep.subr.mxu0 0.0
  %154 = vmatpush2.xpose.msra.mxu0 0.0
  %155 = vmatprep.subr.mxu0 0.0
  %156 = vmatpush2.xpose.msra.mxu0 0.0
  %157 = vmatprep.subr.mxu0 0.0
  %158 = vmatpush2.xpose.msra.mxu0 0.0
  %159 = vmatprep.subr.mxu0 0.0
  %160 = vmatpush2.xpose.msra.mxu0 0.0
  %161 = vmatprep.subr.mxu0 0.0
  %162 = vmatpush2.xpose.msra.mxu0 0.0
  %163 = vmatprep.subr.mxu0 0.0
  %164 = vmatpush2.xpose.msra.mxu0 0.0
  %165 = vmatprep.subr.mxu0 0.0
  %166 = vmatpush2.xpose.msra.mxu0 0.0
  %167 = vmatprep.subr.mxu0 0.0
  %168 = vmatpush2.xpose.msra.mxu0 0.0
  %169 = vmatprep.mubr.f32.mxu0 0.0
  %170 = vmatmul.mubr.f32.gmra.mxu0 1.0
  %v171 = vpop.f32.mrf.mxu0
  %v172 = vadd.f32 0.0, %v171
  %v173 = vpop.f32.mrf.mxu0
  %174 = vdwg.mxu0
  %v175 = vadd.f32 %v104, %v172
  %176 = vst.msk [vmem:[#allocation4] sm:$0xff] %vm101, %v175
  %v177 = vld [vmem:[#allocation3] sm:$0xff]
  %v178 = vmul.f32 %v28, %v28
  %179 = vadd.xlane.f32.xlu0 %v178
  %v180 = vpop.xlane.xlu0 %179
  %v181 = vadd.f32 %v177, %v180
  %vm182 = vcmask 7168
  %183 = vst.msk [vmem:[#allocation3] sm:$0xff] %vm182, %v181
  // Predicated region
  $region18: #{tpu_custom_call.1} parent=0 // pred_check
    %p184 = pneg %p16
  $region19: #{tpu_custom_call.1} parent=0 // pred_check_branch
    %186 = sbr.rel (%p184) target = $region21
  $region20: #{tpu_custom_call.1} parent=0 // pred_region
    %v187 = vld [vmem:[#allocation3] sm:$0xff]
    %v188 = vld [vmem:[#allocation4] sm:$0x1]
    %190 = vset.pattern.permute.xlu0 0
    %191 = vperm.xlu0 %190, %v187
    %v192 = vpop.permute.xlu0 %191
    %v194 = vlaneseq
    %v195 = vshrl.u32 %v194, 7
    %v196 = vsub.s32 0, %v195
    %v197 = vrot.slane %v188, %v196
    %v198 = vadd.f32 %v192, %v197
    %v199 = vld [vmem:[#allocation2] sm:$0xff]
    %v200 = vmul.f32 %v199, 2.0
    %v201 = vsub.f32 %v198, %v200
    %v202 = vld [vmem:[%s1] sm:$0xff]
    %v203 = vld [vmem:[%s2] sm:$0x1]
    %204 = vset.pattern.permute.xlu0 0
    %205 = vperm.xlu0 %204, %v202
    %v206 = vpop.permute.xlu0 %205
    %v207 = vlaneseq
    %v208 = vshrl.u32 %v207, 7
    %v209 = vsub.s32 0, %v208
    %v210 = vrot.slane %v203, %v209
    %vm211 = vcmp.eq.s32.totalorder %v206, %v210
    %v212 = vlaneseq
    %v213 = vand.u32 %v212, 127
    %vm214 = vcmp.lt.s32.totalorder %v213, 8
    %vm215 = vmand %vm211, %vm214
    %v216 = vsel %vm215, %v201, -inf
    %v217 = vsel %vm101, %v216, -inf
    %218 = vmax.xlane.f32.xlu0 %v217
    %v219 = vpop.xlane.xlu0 %218
    %vm220 = vmxor %vm211, 1
    %vm221 = vmand %vm220, %vm214
    %v222 = vsel %vm221, %v201, inf
    %v223 = vsel %vm101, %v222, inf
    %224 = vmin.xlane.f32.xlu0 %v223
    %v225 = vpop.xlane.xlu0 %224
    %v226 = vmax.f32 %v219, 1e-12
    %v227 = vrsqrt.pop %v226
    %v228 = vmul.f32 %v226, %v227
    %vm229 = vcmp.eq.f32.partialorder %v226, inf
    %v230 = vsel %vm229, %v226, %v228
    %vm231 = vcmp.eq.f32.partialorder %v226, 0.0
    %v232 = vand.u32 %v226, 2147483648
    %v233 = vsel %vm231, %v232, %v230
    %v234 = vmax.f32 %v225, 1e-12
    %v235 = vrsqrt.pop %v234
    %v236 = vmul.f32 %v234, %v235
    %vm237 = vcmp.eq.f32.partialorder %v234, inf
    %v238 = vsel %vm237, %v234, %v236
    %vm239 = vcmp.eq.f32.partialorder %v234, 0.0
    %v240 = vand.u32 %v234, 2147483648
    %v241 = vsel %vm239, %v240, %v238
    %v242 = vsub.f32 %v233, %v241
    %v243 = vadd.f32 %v242, 0.3
    %v244 = vmax.f32 %v243, 0.0
    %245 = vst.msk [vmem:[%s3] sm:$0xff] %vm182, %v244
    %vm246 = vcmp.ge.f32.partialorder %v241, %v233
    %v247 = vsel %vm246, 1, 0
    %248 = vst.msk [vmem:[%s4] sm:$0xff] %vm182, %v247
  $region21: #{tpu_custom_call.1} parent=0 // pred_fallthru
    _
  // Predicated region
  $region22: #{tpu_custom_call.1} parent=0 // pred_check
    _
  $region23: #{tpu_custom_call.1} parent=0 // pred_check_branch
    %250 = sbr.rel (0) target = $region25
  $region24: #{tpu_custom_call.1} parent=0 // pred_region
    _
  $region25: #{tpu_custom_call.1} parent=0 // pred_fallthru
    _
  // Predicated region
  $region26: #{tpu_custom_call.1} parent=0 // pred_check
    _
  $region27: #{tpu_custom_call.1} parent=0 // pred_check_branch
    %252 = sbr.rel (0) target = $region29
  $region28: #{tpu_custom_call.1} parent=0 // pred_region
    _
  $region29: #{tpu_custom_call.1} parent=0 // pred_fallthru
    _
  // Predicated region
  $region30: #{tpu_custom_call.1} parent=0 // pred_check
    _
  $region31: #{tpu_custom_call.1} parent=0 // pred_check_branch
    %254 = sbr.rel (0) target = $region33
  $region32: #{tpu_custom_call.1} parent=0 // pred_region
    _
  $region33: #{tpu_custom_call.1} parent=0 // pred_fallthru
    _
  // Predicated region
  $region34: #{tpu_custom_call.1} parent=0 // pred_check
    _
  $region35: #{tpu_custom_call.1} parent=0 // pred_check_branch
    %256 = sbr.rel (0) target = $region37
  $region36: #{tpu_custom_call.1} parent=0 // pred_region
    _
  $region37: #{tpu_custom_call.1} parent=0 // pred_fallthru
    _

</llo_original>
